<compile_context>
chip_gen: v7x
topology: tpu7x:2x2x1
jax: 0.10.0
libtpu: 0.0.40
codegen_flags: <defaults>
</compile_context>

<pallas_src>
import jax
import jax.numpy as jnp
from jax.experimental import pallas as pl
from jax.experimental.pallas import tpu as pltpu


def _sample_layer_kernel(x_ref, u_ref, o_ref):
    # Cast in-register so bf16 logits can be fed without a wrapper-side upcast.
    x = x_ref[...].astype(jnp.float32)
    # Keep u strictly positive so log(u) stays finite (u == 0 would give a -inf
    # perturbation, which never wins the argmax anyway; p < 2^-24).
    u = jnp.maximum(u_ref[...], 1e-20)

    # Gumbel perturbation: x - log(-log(u))   (2 EUP logs / element, hidden
    # behind the HBM stream), then lane-axis argmax (XLU reduction).
    vals = x - jnp.log(-jnp.log(u))

    o_ref[...] = jnp.argmax(vals, axis=1).astype(jnp.int32)[:, None]


# Per-input tile target.  2 inputs x 2 double-buffers x 2 MiB ~= 8 MiB resident
# in VMEM -> comfortably under the 32 MiB scoped default on every chip while
# big enough (>= 512 lanes-equivalent rows for typical N) to sit near the HBM
# roofline.
_TARGET_TILE_BYTES = 2 * 1024 * 1024


def _pick_tile_b(B: int, N: int) -> int:
    bytes_per_row = N * 4  # f32 logits (noise row is the same size)
    rows = max(8, _TARGET_TILE_BYTES // max(bytes_per_row, 1))
    rows = (rows // 8) * 8          # sublane-aligned when tiling
    if rows >= B:
        return B                    # single block (block dim == full dim is OK)
    return rows


def sample_layer(x, key):
    """Pallas implementation of SampleLayer.forward.

    Args:
      x:   (B, N) float array of logits (f32 or bf16).
      key: jax.random key standing in for torch's global RNG state.
    Returns:
      (B,) int32 array of sampled indices (argmax over dim=1 of the
      Gumbel-perturbed logits).
    """
    B, N = x.shape
    # torch.rand_like(x): U[0,1) noise, same shape as x (kept f32 so the log
    # transform has full precision regardless of the logits dtype).
    u = jax.random.uniform(key, (B, N), dtype=jnp.float32)

    tile_b = _pick_tile_b(B, N)
    grid = (pl.cdiv(B, tile_b),)

    out = pl.pallas_call(
        _sample_layer_kernel,
        out_shape=jax.ShapeDtypeStruct((B, 1), jnp.int32),
        grid=grid,
        in_specs=[
            pl.BlockSpec((tile_b, N), lambda i: (i, 0)),   # logits tile
            pl.BlockSpec((tile_b, N), lambda i: (i, 0)),   # uniform noise tile
        ],
        out_specs=pl.BlockSpec((tile_b, 1), lambda i: (i, 0)),
        compiler_params=pltpu.CompilerParams(
            dimension_semantics=("parallel",)),
        cost_estimate=pl.CostEstimate(
            flops=3 * B * N,                 # sub + max-scan + compare (approx)
            transcendentals=2 * B * N,       # two logs per element
            bytes_accessed=2 * 4 * B * N + 4 * B),
    )(x, u)
    return out[:, 0]


def _sample_layer_ref(x, key):
    """Pure-JAX reference with identical math for correctness checking."""
    u = jax.random.uniform(key, x.shape, dtype=jnp.float32)
    u = jnp.maximum(u, 1e-20)
    return jnp.argmax(x.astype(jnp.float32) - jnp.log(-jnp.log(u)), axis=1)


if __name__ == "__main__":
    key = jax.random.PRNGKey(0)
    kx, kn = jax.random.split(key)

    B, N = 8, 128  # batch of 8 states, 128 "actions" (lane-aligned)
    x = jax.random.normal(kx, (B, N), dtype=jnp.float32)

    idx = sample_layer(x, kn)
    jax.block_until_ready(idx)

    # Sanity: shape, range, and exact agreement with the pure-JAX reference
    # that consumes the same uniform noise.
    assert idx.shape == (B,)
    assert bool(jnp.all((idx >= 0) & (idx < N)))
    ref = _sample_layer_ref(x, kn)
    assert bool(jnp.all(idx == ref.astype(jnp.int32)))

    print("KERNEL_OK")
</pallas_src>

<mosaic_0001>
module attributes {stable_mosaic.version = 11 : i64} {
  func.func @_sample_layer_kernel(%arg0: i32, %arg1: memref<8x128xf32, #tpu.memory_space<vmem>>, %arg2: memref<8x128xf32, #tpu.memory_space<vmem>>, %arg3: memref<8x1xi32, #tpu.memory_space<vmem>>) attributes {dimension_semantics = [#tpu.dimension_semantics<parallel>], iteration_bounds = array<i64: 1>, scalar_prefetch = 0 : i64, scratch_operands = 0 : i64, tpu.core_type = #tpu.core_type<tc>, window_params = [{transform_indices = @transform_0, window_bounds = array<i64: 8, 128>}, {transform_indices = @transform_1, window_bounds = array<i64: 8, 128>}, {transform_indices = @transform_2, window_bounds = array<i64: 8, 1>}]} {
    %c0 = arith.constant 0 : index
    %c0_0 = arith.constant 0 : index
    %0 = vector.load %arg1[%c0, %c0_0] : memref<8x128xf32, #tpu.memory_space<vmem>>, vector<8x128xf32>
    %c0_1 = arith.constant 0 : index
    %c0_2 = arith.constant 0 : index
    %1 = vector.load %arg2[%c0_1, %c0_2] : memref<8x128xf32, #tpu.memory_space<vmem>>, vector<8x128xf32>
    %cst = arith.constant 9.99999968E-21 : f32
    %2 = vector.broadcast %cst : f32 to vector<8x128xf32>
    %3 = arith.maximumf %1, %2 : vector<8x128xf32>
    %4 = math.log %3 : vector<8x128xf32>
    %cst_3 = arith.constant 0.000000e+00 : f32
    %5 = vector.broadcast %cst_3 : f32 to vector<8x128xf32>
    %6 = arith.subf %5, %4 : vector<8x128xf32>
    %7 = math.log %6 : vector<8x128xf32>
    %8 = arith.subf %0, %7 : vector<8x128xf32>
    %9 = tpu.reduce_index %8 {axis = 1 : i32, kind = #tpu.reduction_kind<arg_max>} : vector<8x128xf32> -> vector<8xi32>
    %10 = vector.shape_cast %9 : vector<8xi32> to vector<8x1xi32>
    %c0_4 = arith.constant 0 : index
    %c0_5 = arith.constant 0 : index
    %11 = vector.load %arg3[%c0_4, %c0_5] : memref<8x1xi32, #tpu.memory_space<vmem>>, vector<8x1xi32>
    tpu.vector_store %arg3[%c0_4, %c0_5], %10 {strides = array<i32>} : memref<8x1xi32, #tpu.memory_space<vmem>>, vector<8x1xi32>,
    return
  }
  func.func @transform_0(%arg0: i32) -> (i32, i32) {
    %c0_i32 = arith.constant 0 : i32
    %c0_i32_0 = arith.constant 0 : i32
    return %arg0, %c0_i32 : i32, i32
  }
  func.func @transform_1(%arg0: i32) -> (i32, i32) {
    %c0_i32 = arith.constant 0 : i32
    %c0_i32_0 = arith.constant 0 : i32
    return %arg0, %c0_i32 : i32, i32
  }
  func.func @transform_2(%arg0: i32) -> (i32, i32) {
    %c0_i32 = arith.constant 0 : i32
    %c0_i32_0 = arith.constant 0 : i32
    return %arg0, %c0_i32 : i32, i32
  }
}

</mosaic_0001>

<llo_original>
// kernel: tpu_custom_call.1
$region0: #{tpu_custom_call.1}
  #allocation0 [shape = 'u32[]', space=smem, size = 0x4, offset = 0x4, fixed_abs, tag = 'smem constant byte address 0x4 - core index']
  #allocation1 [shape = 'u32[144,128]{1,0:T(1,128)}', space=vmem, size = 0x12000, scoped, tag = 'internal scratch']
  %s0 = inlined_call_operand.hbm [shape: f32[8,128], index: 0, kind: input, shape index: {}]
  %s1 = inlined_call_operand.hbm [shape: f32[8,128], index: 1, kind: input, shape index: {}]
  %s2 = inlined_call_operand.vmem [shape: s32[8,1], index: 2, kind: output, shape index: {}]
  %s3 = sld [smem:[#allocation0]]
  $region26: #{tpu_custom_call.1} parent=0
    _
  %s5 = ssub.s32 1, %s3
  %s6 = scalar_select 0, %s5, %s3
  $region1: #{tpu_custom_call.1} parent=0
    #allocation2 [shape = 'u8[4096]{0}', space=vmem, size = 0x1000, scoped, tag = 'input window, operand 0, single buffered']
    #allocation3 [shape = 's32[1]{0}', space=sflag, size = 0x4, scoped, tag = 'scoped memory for tpu_custom_call.1']
    #allocation4 [shape = 'u8[4096]{0}', space=vmem, size = 0x1000, scoped, tag = 'input window, operand 1, single buffered']
    #allocation5 [shape = 's32[1]{0}', space=sflag, size = 0x4, scoped, tag = 'scoped memory for tpu_custom_call.1']
    %7 = vsyncpa [#allocation3], 0
    %8 = vsyncpa [#allocation5], 0
    // Predicated region
    $region2: #{tpu_custom_call.1} parent=1 // pred_check
      _
    $region3: #{tpu_custom_call.1} parent=1 // pred_check_branch
      %10 = sbr.rel (0) target = $region5
    $region4: #{tpu_custom_call.1} parent=1 // pred_region
      %s12 = ssub.s32 128, 128
      %13 = vsyncadd [#allocation3], %s12
      %s15 = sshll.u32 [#allocation2], 4
      %s16 = int_to_ptr.vmem [resolvable:$true] %s15
      %18 = dma.hbm_to_vmem [thread:$0]  %s0, 128, %s16, [#allocation3]
    $region5: #{tpu_custom_call.1} parent=1 // pred_fallthru
      _
    // Predicated region
    $region6: #{tpu_custom_call.1} parent=1 // pred_check
      _
    $region7: #{tpu_custom_call.1} parent=1 // pred_check_branch
      %20 = sbr.rel (0) target = $region9
    $region8: #{tpu_custom_call.1} parent=1 // pred_region
      %s22 = ssub.s32 128, 128
      %23 = vsyncadd [#allocation5], %s22
      %s25 = sshll.u32 [#allocation4], 4
      %s26 = int_to_ptr.vmem [resolvable:$true] %s25
      %28 = dma.hbm_to_vmem [thread:$0]  %s1, 128, %s26, [#allocation5]
    $region9: #{tpu_custom_call.1} parent=1 // pred_fallthru
      _
    // Predicated region
    $region10: #{tpu_custom_call.1} parent=1 // pred_check
      _
    $region11: #{tpu_custom_call.1} parent=1 // pred_check_branch
      %30 = sbr.rel (0) target = $region13
    $region12: #{tpu_custom_call.1} parent=1 // pred_region
      %31 = dma.done [#allocation3], 128
    $region13: #{tpu_custom_call.1} parent=1 // pred_fallthru
      _
    // Predicated region
    $region14: #{tpu_custom_call.1} parent=1 // pred_check
      _
    $region15: #{tpu_custom_call.1} parent=1 // pred_check_branch
      %33 = sbr.rel (0) target = $region17
    $region16: #{tpu_custom_call.1} parent=1 // pred_region
      %34 = dma.done [#allocation5], 128
    $region17: #{tpu_custom_call.1} parent=1 // pred_fallthru
      _
    %v35 = vld [vmem:[#allocation2] sm:$0xff]
    %v36 = vld [vmem:[#allocation4] sm:$0xff]
    %v37 = vmax.f32 %v36, 1e-20
    %v38 = vlog2.pop %v37
    %v39 = vmul.f32 %v38, 0.6931472
    %v40 = vsub.f32 0.0, %v39
    %v41 = vlog2.pop %v40
    %v42 = vmul.f32 %v41, 0.6931472
    %v43 = vsub.f32 %v35, %v42
    %44 = vmax.index.xlane.f32.xlu0 %v43
    %v45 = vpop.xlane.xlu0 %44
    %vm46 = vcmask 7168
    %47 = vst.msk [vmem:[%s2] sm:$0xff] %vm46, %v45
    // Predicated region
    $region18: #{tpu_custom_call.1} parent=1 // pred_check
      _
    $region19: #{tpu_custom_call.1} parent=1 // pred_check_branch
      %49 = sbr.rel (0) target = $region21
    $region20: #{tpu_custom_call.1} parent=1 // pred_region
      _
    $region21: #{tpu_custom_call.1} parent=1 // pred_fallthru
      _
    // Predicated region
    $region22: #{tpu_custom_call.1} parent=1 // pred_check
      _
    $region23: #{tpu_custom_call.1} parent=1 // pred_check_branch
      %51 = sbr.rel (0) target = $region25
    $region24: #{tpu_custom_call.1} parent=1 // pred_region
      _
    $region25: #{tpu_custom_call.1} parent=1 // pred_fallthru
      _
    %52 = vsyncpa [#allocation3], 1
    %53 = vsyncpa [#allocation5], 1

</llo_original>
